<compile_context>
chip_gen: v5e
topology: v5e:2x2
jax: 0.10.0
libtpu: 0.0.40
codegen_flags: <defaults>
</compile_context>

<pallas_src>
import math
from functools import partial

import numpy as np
import jax
import jax.numpy as jnp
from jax.experimental import pallas as pl
from jax.experimental.pallas import tpu as pltpu

# ----- synthetic config (small, consistent with AlbertConfig fields) ---------
BATCH = 2
SEQ = 8
HIDDEN = 32
NUM_HEADS = 4
HEAD_SIZE = HIDDEN // NUM_HEADS
LN_EPS = 1e-12                 # config.layer_norm_eps

NEG_INF = -1e9                 # cross-batch key masking inside the folded score matrix
PROJ_PAD = 128                 # each of Q/K/V lives in its own 128-lane block


# ------------------------------ Pallas kernel --------------------------------
def albert_attention_kernel(x_ref, mask_ref, wqkv_ref, wd_ref, slab_ref,
                            gt_ref, g_ref, hsel_ref, bbias_ref, out_ref,
                            *, batch, seq, hidden, num_heads, eps):
    B, S, H = batch, seq, hidden
    R = B * S                       # query rows (batch*seq)
    Z = num_heads * R               # (head, batch, seq) rows — heads on the sublane axis

    x = x_ref[...]                                   # (B, S, H) f32
    x2 = x.reshape(R, H)                             # leading-dim merge (layout-preserving)

    # ---- fused, padded QKV projection: one MXU pass --------------------------
    # wqkv: (H, 3*128); Q (pre-scaled by 1/sqrt(head_size)) at lanes [0:H],
    # K at [128:128+H], V at [256:256+H]; all padding columns are zero.
    qkv = jnp.dot(x2.astype(jnp.bfloat16), wqkv_ref[...],
                  preferred_element_type=jnp.float32)          # (R, 384) f32
    slab = slab_ref[...]                                       # (4, 384) f32
    qkv = qkv + slab[0:1, :]                                   # ONE broadcast bias add
    qkv_bf = qkv.astype(jnp.bfloat16)                          # ONE bf16 cast

    # 128-aligned, full-block slices — no lane realignment needed.
    q = qkv_bf[:, 0 * PROJ_PAD:1 * PROJ_PAD]                   # (R, 128), cols >= H are 0
    k = qkv_bf[:, 1 * PROJ_PAD:2 * PROJ_PAD]                   # (R, 128)
    v = qkv_bf[:, 2 * PROJ_PAD:3 * PROJ_PAD]                   # (R, 128)

    gt = gt_ref[...]                                           # (Z, R)  bf16 0/1 replicate
    g = g_ref[...]                                             # (R, Z)  bf16 0/1 merge
    hsel = hsel_ref[...]                                       # (Z, 128) f32 block-diag head sel

    # ---- heads on the sublane axis: replicate queries via the MXU, then mask -
    # Row z = n*R + (b*S + i)  <->  (head n, batch b, query i).
    q_rep = jnp.dot(gt, q, preferred_element_type=jnp.float32)  # (Z, 128)
    q_all = (q_rep * hsel).astype(jnp.bfloat16)                 # keep only head-n's columns

    # scores[z, b'*S + j] = <q_head_n(b, i), k(b', j)>  (scale already folded into Wq/bq)
    scores = jax.lax.dot_general(q_all, k, (((1,), (1,)), ((), ())),
                                 preferred_element_type=jnp.float32)   # (Z, R)

    # Cross-batch key columns get a constant -1e9; the additive attention mask is
    # broadcast over ALL rows (its key column index ignores the row's batch).  This is
    # correct only because the HF extended mask is <= 0, so cross-batch columns stay
    # <= -1e9 and underflow to exactly 0 after softmax.  Even a finfo.min-style mask is
    # safe here: the softmax runs in f32 with max-subtraction, so exp() -> 0, never NaN.
    scores = scores + bbias_ref[...] + mask_ref[...]            # (Z,R) + (Z,R) + (1,R)

    # ---- softmax over keys (f32; approx reciprocal on EUP, ~1e-3 rel err) ----
    scores = scores - jnp.max(scores, axis=-1, keepdims=True)
    p = jnp.exp(scores)
    p = p * pl.reciprocal(jnp.sum(p, axis=-1, keepdims=True), approx=True)

    # ---- context; fold heads back with one constant gather matmul on the MXU -
    ctx = jnp.dot(p.astype(jnp.bfloat16), v,
                  preferred_element_type=jnp.float32)           # (Z, 128)
    ctx = (ctx * hsel).astype(jnp.bfloat16)                     # zero other heads' columns
    merged = jnp.dot(g, ctx, preferred_element_type=jnp.float32)  # (R, 128) == concat heads

    # ---- output dense + residual + LayerNorm ----------------------------------
    # wd: (128, H) with rows >= H zero, so the padded columns of `merged` are inert.
    proj = jnp.dot(merged.astype(jnp.bfloat16), wd_ref[...],
                   preferred_element_type=jnp.float32)          # (R, H)
    proj = proj + slab[1:2, 0:H]
    y = x2 + proj
    mean = jnp.mean(y, axis=-1, keepdims=True)
    var = jnp.mean(jnp.square(y - mean), axis=-1, keepdims=True)
    y = (y - mean) * jax.lax.rsqrt(var + eps) * slab[2:3, 0:H] + slab[3:4, 0:H]

    out_ref[...] = y.reshape(B, S, H).astype(out_ref.dtype)


# ------------------------------ wrapper ---------------------------------------
def albert_attention_forward(hidden_states, attention_mask, params):
    """hidden_states: (B, S, H) f32.  attention_mask: (B, 1, S) additive mask."""
    B, S, H = hidden_states.shape
    mask_flat = attention_mask.reshape(1, B * S).astype(jnp.float32)

    kernel = partial(albert_attention_kernel,
                     batch=B, seq=S, hidden=H, num_heads=NUM_HEADS, eps=LN_EPS)

    vmem = pl.BlockSpec(memory_space=pltpu.MemorySpace.VMEM)
    return pl.pallas_call(
        kernel,
        out_shape=jax.ShapeDtypeStruct((B, S, H), hidden_states.dtype),
        in_specs=[vmem] * 9,
        out_specs=vmem,
    )(hidden_states, mask_flat, params["w_qkv"], params["w_d"], params["slab"],
      params["gt"], params["g"], params["head_sel"], params["batch_bias"])


# ------------------------- pure-JAX reference (f32) ---------------------------
def albert_attention_reference(x, mask, raw):
    H, NH, HS = HIDDEN, NUM_HEADS, HEAD_SIZE
    B, S, _ = x.shape

    def split(t):                      # (B,S,H) -> (B,NH,S,HS)
        return t.reshape(B, S, NH, HS).transpose(0, 2, 1, 3)

    q = split(x @ raw["w_q"] + raw["b_q"])
    k = split(x @ raw["w_k"] + raw["b_k"])
    v = split(x @ raw["w_v"] + raw["b_v"])
    s = jnp.einsum('bnqd,bnkd->bnqk', q, k) / math.sqrt(HS)
    s = s + mask[:, None, :, :]
    p = jax.nn.softmax(s, axis=-1)
    ctx = jnp.einsum('bnqk,bnkd->bnqd', p, v).transpose(0, 2, 1, 3).reshape(B, S, H)
    y = x + (ctx @ raw["w_d"] + raw["b_d"])
    mean = y.mean(-1, keepdims=True)
    var = ((y - mean) ** 2).mean(-1, keepdims=True)
    return (y - mean) / jnp.sqrt(var + LN_EPS) * raw["ln_g"] + raw["ln_b"]


# ------------------------- deterministic parameter init ----------------------
def init_params(key):
    ks = jax.random.split(key, 8)

    def lin_w(k, din, dout):
        return jax.random.normal(k, (din, dout), jnp.float32) * 0.05   # (in, out) = torch W^T

    def lin_b(k, dout):
        return jax.random.normal(k, (dout,), jnp.float32) * 0.01

    w_q, w_k, w_v, w_d = (lin_w(ks[i], HIDDEN, HIDDEN) for i in range(4))
    b_q, b_k, b_v, b_d = (lin_b(ks[4 + i], HIDDEN) for i in range(4))
    ln_g = jnp.ones((HIDDEN,), jnp.float32)
    ln_b = jnp.zeros((HIDDEN,), jnp.float32)

    raw = dict(w_q=w_q, w_k=w_k, w_v=w_v, w_d=w_d,
               b_q=b_q, b_k=b_k, b_v=b_v, b_d=b_d, ln_g=ln_g, ln_b=ln_b)

    H, P = HIDDEN, PROJ_PAD
    scale = 1.0 / math.sqrt(HEAD_SIZE)              # folded into Wq / bq at pack time

    w_qkv = np.zeros((H, 3 * P), np.float32)        # Q | K | V, each in its own 128-lane block
    w_qkv[:, 0:H] = np.asarray(w_q) * scale
    w_qkv[:, P:P + H] = np.asarray(w_k)
    w_qkv[:, 2 * P:2 * P + H] = np.asarray(w_v)

    w_d_pad = np.zeros((P, H), np.float32)          # padded rows contribute nothing
    w_d_pad[0:H, :] = np.asarray(w_d)

    slab = np.zeros((4, 3 * P), np.float32)         # row0: fused qkv bias (q pre-scaled)
    slab[0, 0:H] = np.asarray(b_q) * scale
    slab[0, P:P + H] = np.asarray(b_k)
    slab[0, 2 * P:2 * P + H] = np.asarray(b_v)
    slab[1, 0:H] = np.asarray(b_d)                  # row1: dense bias
    slab[2, 0:H] = np.asarray(ln_g)                 # row2: LN gamma
    slab[3, 0:H] = np.asarray(ln_b)                 # row3: LN beta

    R = BATCH * SEQ
    Z = NUM_HEADS * R
    gt = np.tile(np.eye(R, dtype=np.float32), (NUM_HEADS, 1))   # (Z, R): Gt[n*R+r, r] = 1
    g = np.ascontiguousarray(gt.T)                              # (R, Z): head merge

    head_sel = np.zeros((Z, P), np.float32)                     # block-diagonal head selector
    for n in range(NUM_HEADS):
        head_sel[n * R:(n + 1) * R, n * HEAD_SIZE:(n + 1) * HEAD_SIZE] = 1.0

    row_b = (np.arange(Z) % R) // SEQ
    col_b = np.arange(R) // SEQ
    batch_bias = np.where(row_b[:, None] == col_b[None, :], 0.0, NEG_INF).astype(np.float32)

    params = dict(
        w_qkv=jnp.asarray(w_qkv, jnp.bfloat16),
        w_d=jnp.asarray(w_d_pad, jnp.bfloat16),
        slab=jnp.asarray(slab, jnp.float32),
        gt=jnp.asarray(gt, jnp.bfloat16),
        g=jnp.asarray(g, jnp.bfloat16),
        head_sel=jnp.asarray(head_sel, jnp.float32),
        batch_bias=jnp.asarray(batch_bias, jnp.float32),
    )
    return params, raw


if __name__ == "__main__":
    key = jax.random.PRNGKey(0)
    kx, kp = jax.random.split(key)

    hidden_states = jax.random.normal(kx, (BATCH, SEQ, HIDDEN), jnp.float32)
    # additive attention mask (0 = attend everywhere), shape (B, 1, S)
    attention_mask = jnp.zeros((BATCH, 1, SEQ), jnp.float32)
    params, raw = init_params(kp)

    out = jax.jit(albert_attention_forward)(hidden_states, attention_mask, params)
    out = jax.block_until_ready(out)

    ref = albert_attention_reference(hidden_states, attention_mask, raw)

    assert out.shape == (BATCH, SEQ, HIDDEN)
    assert bool(jnp.all(jnp.isfinite(out)))
    assert float(jnp.max(jnp.abs(out - ref))) < 3e-2   # bf16-matmul tolerance
    print("KERNEL_OK")
</pallas_src>

<mosaic_0001>
module attributes {stable_mosaic.version = 11 : i64} {
  func.func @albert_attention_kernel(%arg0: memref<2x8x32xf32, #tpu.memory_space<vmem>>, %arg1: memref<1x16xf32, #tpu.memory_space<vmem>>, %arg2: memref<32x384xbf16, #tpu.memory_space<vmem>>, %arg3: memref<128x32xbf16, #tpu.memory_space<vmem>>, %arg4: memref<4x384xf32, #tpu.memory_space<vmem>>, %arg5: memref<64x16xbf16, #tpu.memory_space<vmem>>, %arg6: memref<16x64xbf16, #tpu.memory_space<vmem>>, %arg7: memref<64x128xf32, #tpu.memory_space<vmem>>, %arg8: memref<64x16xf32, #tpu.memory_space<vmem>>, %arg9: memref<2x8x32xf32, #tpu.memory_space<vmem>>) attributes {dimension_semantics = [], scalar_prefetch = 0 : i64, scratch_operands = 0 : i64, tpu.core_type = #tpu.core_type<tc>} {
    %c0 = arith.constant 0 : index
    %c0_0 = arith.constant 0 : index
    %c0_1 = arith.constant 0 : index
    %0 = vector.load %arg0[%c0, %c0_0, %c0_1] : memref<2x8x32xf32, #tpu.memory_space<vmem>>, vector<2x8x32xf32>
    %1 = vector.shape_cast %0 : vector<2x8x32xf32> to vector<16x32xf32>
    %2 = arith.truncf %1 : vector<16x32xf32> to vector<16x32xbf16>
    %c0_2 = arith.constant 0 : index
    %c0_3 = arith.constant 0 : index
    %3 = vector.load %arg2[%c0_2, %c0_3] : memref<32x384xbf16, #tpu.memory_space<vmem>>, vector<32x384xbf16>
    %cst = arith.constant dense<0.000000e+00> : vector<16x384xf32>
    %4 = tpu.matmul %2, %3, %cst {dimension_numbers = #tpu.dot_dimension_numbers<[1], [0], [0], [1], [0, 0, 1, 1], [], []>} : vector<16x32xbf16>, vector<32x384xbf16>, vector<16x384xf32> -> vector<16x384xf32>
    %c0_4 = arith.constant 0 : index
    %c0_5 = arith.constant 0 : index
    %5 = vector.load %arg4[%c0_4, %c0_5] : memref<4x384xf32, #tpu.memory_space<vmem>>, vector<4x384xf32>
    %6 = vector.extract_strided_slice %5 {offsets = [0, 0], sizes = [1, 384], strides = [1, 1]} : vector<4x384xf32> to vector<1x384xf32>
    %7 = vector.broadcast %6 : vector<1x384xf32> to vector<16x384xf32>
    %8 = arith.addf %4, %7 : vector<16x384xf32>
    %9 = arith.truncf %8 : vector<16x384xf32> to vector<16x384xbf16>
    %10 = vector.extract_strided_slice %9 {offsets = [0, 0], sizes = [16, 128], strides = [1, 1]} : vector<16x384xbf16> to vector<16x128xbf16>
    %11 = vector.extract_strided_slice %9 {offsets = [0, 128], sizes = [16, 128], strides = [1, 1]} : vector<16x384xbf16> to vector<16x128xbf16>
    %12 = vector.extract_strided_slice %9 {offsets = [0, 256], sizes = [16, 128], strides = [1, 1]} : vector<16x384xbf16> to vector<16x128xbf16>
    %c0_6 = arith.constant 0 : index
    %c0_7 = arith.constant 0 : index
    %13 = vector.load %arg5[%c0_6, %c0_7] : memref<64x16xbf16, #tpu.memory_space<vmem>>, vector<64x16xbf16>
    %c0_8 = arith.constant 0 : index
    %c0_9 = arith.constant 0 : index
    %14 = vector.load %arg6[%c0_8, %c0_9] : memref<16x64xbf16, #tpu.memory_space<vmem>>, vector<16x64xbf16>
    %c0_10 = arith.constant 0 : index
    %c0_11 = arith.constant 0 : index
    %15 = vector.load %arg7[%c0_10, %c0_11] : memref<64x128xf32, #tpu.memory_space<vmem>>, vector<64x128xf32>
    %cst_12 = arith.constant dense<0.000000e+00> : vector<64x128xf32>
    %16 = tpu.matmul %13, %10, %cst_12 {dimension_numbers = #tpu.dot_dimension_numbers<[1], [0], [0], [1], [0, 0, 1, 1], [], []>} : vector<64x16xbf16>, vector<16x128xbf16>, vector<64x128xf32> -> vector<64x128xf32>
    %17 = arith.mulf %16, %15 : vector<64x128xf32>
    %18 = arith.truncf %17 : vector<64x128xf32> to vector<64x128xbf16>
    %cst_13 = arith.constant dense<0.000000e+00> : vector<64x16xf32>
    %19 = tpu.matmul %18, %11, %cst_13 {dimension_numbers = #tpu.dot_dimension_numbers<[1], [1], [0], [0], [0, 0, 1, 0], [], []>} : vector<64x128xbf16>, vector<16x128xbf16>, vector<64x16xf32> -> vector<64x16xf32>
    %c0_14 = arith.constant 0 : index
    %c0_15 = arith.constant 0 : index
    %20 = vector.load %arg8[%c0_14, %c0_15] : memref<64x16xf32, #tpu.memory_space<vmem>>, vector<64x16xf32>
    %21 = arith.addf %19, %20 : vector<64x16xf32>
    %c0_16 = arith.constant 0 : index
    %c0_17 = arith.constant 0 : index
    %22 = vector.load %arg1[%c0_16, %c0_17] : memref<1x16xf32, #tpu.memory_space<vmem>>, vector<1x16xf32>
    %23 = vector.broadcast %22 : vector<1x16xf32> to vector<64x16xf32>
    %24 = arith.addf %21, %23 : vector<64x16xf32>
    %cst_18 = arith.constant dense<0xFF800000> : vector<64xf32>
    %25 = vector.multi_reduction <maximumf>, %24, %cst_18 [1] : vector<64x16xf32> to vector<64xf32>
    %26 = vector.shape_cast %25 : vector<64xf32> to vector<64x1xf32>
    %27 = vector.broadcast %26 : vector<64x1xf32> to vector<64x16xf32>
    %28 = arith.subf %24, %27 : vector<64x16xf32>
    %29 = math.exp %28 : vector<64x16xf32>
    %cst_19 = arith.constant dense<0.000000e+00> : vector<64xf32>
    %30 = vector.multi_reduction <add>, %29, %cst_19 [1] : vector<64x16xf32> to vector<64xf32>
    %31 = vector.shape_cast %30 : vector<64xf32> to vector<64x1xf32>
    %32 = tpu.reciprocal %31 {approx = true} : vector<64x1xf32> -> vector<64x1xf32>
    %33 = vector.broadcast %32 : vector<64x1xf32> to vector<64x16xf32>
    %34 = arith.mulf %29, %33 : vector<64x16xf32>
    %35 = arith.truncf %34 : vector<64x16xf32> to vector<64x16xbf16>
    %cst_20 = arith.constant dense<0.000000e+00> : vector<64x128xf32>
    %36 = tpu.matmul %35, %12, %cst_20 {dimension_numbers = #tpu.dot_dimension_numbers<[1], [0], [0], [1], [0, 0, 1, 1], [], []>} : vector<64x16xbf16>, vector<16x128xbf16>, vector<64x128xf32> -> vector<64x128xf32>
    %37 = arith.mulf %36, %15 : vector<64x128xf32>
    %38 = arith.truncf %37 : vector<64x128xf32> to vector<64x128xbf16>
    %cst_21 = arith.constant dense<0.000000e+00> : vector<16x128xf32>
    %39 = tpu.matmul %14, %38, %cst_21 {dimension_numbers = #tpu.dot_dimension_numbers<[1], [0], [0], [1], [0, 0, 1, 1], [], []>} : vector<16x64xbf16>, vector<64x128xbf16>, vector<16x128xf32> -> vector<16x128xf32>
    %40 = arith.truncf %39 : vector<16x128xf32> to vector<16x128xbf16>
    %c0_22 = arith.constant 0 : index
    %c0_23 = arith.constant 0 : index
    %41 = vector.load %arg3[%c0_22, %c0_23] : memref<128x32xbf16, #tpu.memory_space<vmem>>, vector<128x32xbf16>
    %cst_24 = arith.constant dense<0.000000e+00> : vector<16x32xf32>
    %42 = tpu.matmul %40, %41, %cst_24 {dimension_numbers = #tpu.dot_dimension_numbers<[1], [0], [0], [1], [0, 0, 1, 1], [], []>} : vector<16x128xbf16>, vector<128x32xbf16>, vector<16x32xf32> -> vector<16x32xf32>
    %43 = vector.extract_strided_slice %5 {offsets = [1, 0], sizes = [1, 32], strides = [1, 1]} : vector<4x384xf32> to vector<1x32xf32>
    %44 = vector.broadcast %43 : vector<1x32xf32> to vector<16x32xf32>
    %45 = arith.addf %42, %44 : vector<16x32xf32>
    %46 = arith.addf %1, %45 : vector<16x32xf32>
    %cst_25 = arith.constant dense<0.000000e+00> : vector<16xf32>
    %47 = vector.multi_reduction <add>, %46, %cst_25 [1] : vector<16x32xf32> to vector<16xf32>
    %48 = vector.shape_cast %47 : vector<16xf32> to vector<16x1xf32>
    %cst_26 = arith.constant 3.200000e+01 : f32
    %49 = vector.broadcast %cst_26 : f32 to vector<16x1xf32>
    %50 = arith.divf %48, %49 : vector<16x1xf32>
    %51 = vector.broadcast %50 : vector<16x1xf32> to vector<16x32xf32>
    %52 = arith.subf %46, %51 : vector<16x32xf32>
    %53 = arith.mulf %52, %52 : vector<16x32xf32>
    %cst_27 = arith.constant dense<0.000000e+00> : vector<16xf32>
    %54 = vector.multi_reduction <add>, %53, %cst_27 [1] : vector<16x32xf32> to vector<16xf32>
    %55 = vector.shape_cast %54 : vector<16xf32> to vector<16x1xf32>
    %cst_28 = arith.constant 3.200000e+01 : f32
    %56 = vector.broadcast %cst_28 : f32 to vector<16x1xf32>
    %57 = arith.divf %55, %56 : vector<16x1xf32>
    %58 = vector.broadcast %50 : vector<16x1xf32> to vector<16x32xf32>
    %59 = arith.subf %46, %58 : vector<16x32xf32>
    %cst_29 = arith.constant 9.99999996E-13 : f32
    %60 = vector.broadcast %cst_29 : f32 to vector<16x1xf32>
    %61 = arith.addf %57, %60 : vector<16x1xf32>
    %62 = math.rsqrt %61 : vector<16x1xf32>
    %63 = vector.broadcast %62 : vector<16x1xf32> to vector<16x32xf32>
    %64 = arith.mulf %59, %63 : vector<16x32xf32>
    %65 = vector.extract_strided_slice %5 {offsets = [2, 0], sizes = [1, 32], strides = [1, 1]} : vector<4x384xf32> to vector<1x32xf32>
    %66 = vector.broadcast %65 : vector<1x32xf32> to vector<16x32xf32>
    %67 = arith.mulf %64, %66 : vector<16x32xf32>
    %68 = vector.extract_strided_slice %5 {offsets = [3, 0], sizes = [1, 32], strides = [1, 1]} : vector<4x384xf32> to vector<1x32xf32>
    %69 = vector.broadcast %68 : vector<1x32xf32> to vector<16x32xf32>
    %70 = arith.addf %67, %69 : vector<16x32xf32>
    %71 = vector.shape_cast %70 : vector<16x32xf32> to vector<2x8x32xf32>
    %c0_30 = arith.constant 0 : index
    %c0_31 = arith.constant 0 : index
    %c0_32 = arith.constant 0 : index
    %72 = vector.load %arg9[%c0_30, %c0_31, %c0_32] : memref<2x8x32xf32, #tpu.memory_space<vmem>>, vector<2x8x32xf32>
    tpu.vector_store %arg9[%c0_30, %c0_31, %c0_32], %71 {strides = array<i32>} : memref<2x8x32xf32, #tpu.memory_space<vmem>>, vector<2x8x32xf32>,
    return
  }
}

</mosaic_0001>

<llo_original>
// kernel: albert_attention_forward.1
$region0: #{albert_attention_forward.1}
  #allocation0 [shape = 'u32[]', space=smem, size = 0x4, offset = 0x4, fixed_abs, tag = 'smem constant byte address 0x4 - core index']
  #allocation1 [shape = 'u32[72,128]{1,0:T(1,128)}', space=vmem, size = 0x9000, scoped, tag = 'internal scratch']
  %s0 = inlined_call_operand.vmem [shape: f32[2,8,32], index: 0, kind: input, shape index: {}]
  %s1 = inlined_call_operand.vmem [shape: f32[1,16], index: 1, kind: input, shape index: {}]
  %s2 = inlined_call_operand.vmem [shape: bf16[32,384], index: 2, kind: input, shape index: {}]
  %s3 = inlined_call_operand.vmem [shape: bf16[128,32], index: 3, kind: input, shape index: {}]
  %s4 = inlined_call_operand.vmem [shape: f32[4,384], index: 4, kind: input, shape index: {}]
  %s5 = inlined_call_operand.vmem [shape: bf16[64,16], index: 5, kind: input, shape index: {}]
  %s6 = inlined_call_operand.vmem [shape: bf16[16,64], index: 6, kind: input, shape index: {}]
  %s7 = inlined_call_operand.vmem [shape: f32[64,128], index: 7, kind: input, shape index: {}]
  %s8 = inlined_call_operand.vmem [shape: f32[64,16], index: 8, kind: input, shape index: {}]
  %s9 = inlined_call_operand.hbm [shape: f32[2,8,32], index: 9, kind: output, shape index: {}]
  %s10 = sld [smem:[#allocation0]]
  $region46: #{albert_attention_forward.1} parent=0
    _
  %s12 = ssub.s32 1, %s10
  %s13 = scalar_select 0, %s12, %s10
  $region1: #{albert_attention_forward.1} parent=0
    #allocation2 [shape = 'u8[8192]{0}', space=vmem, size = 0x2000, scoped, tag = 'output window, operand 0, single buffered']
    #allocation3 [shape = 's32[1]{0}', space=sflag, size = 0x4, scoped, tag = 'scoped memory for albert_attention_forward.1']
    %14 = vsyncpa [#allocation3], 0
    // Predicated region
    $region2: #{albert_attention_forward.1} parent=1 // pred_check
      _
    $region3: #{albert_attention_forward.1} parent=1 // pred_check_branch
      %16 = sbr.rel (0) target = $region5
    $region4: #{albert_attention_forward.1} parent=1 // pred_region
      _
    $region5: #{albert_attention_forward.1} parent=1 // pred_fallthru
      _
    // Predicated region
    $region6: #{albert_attention_forward.1} parent=1 // pred_check
      _
    $region7: #{albert_attention_forward.1} parent=1 // pred_check_branch
      %18 = sbr.rel (0) target = $region9
    $region8: #{albert_attention_forward.1} parent=1 // pred_region
      _
    $region9: #{albert_attention_forward.1} parent=1 // pred_fallthru
      _
    // Predicated region
    $region10: #{albert_attention_forward.1} parent=1 // pred_check
      _
    $region11: #{albert_attention_forward.1} parent=1 // pred_check_branch
      %20 = sbr.rel (0) target = $region13
    $region12: #{albert_attention_forward.1} parent=1 // pred_region
      _
    $region13: #{albert_attention_forward.1} parent=1 // pred_fallthru
      _
    // Predicated region
    $region14: #{albert_attention_forward.1} parent=1 // pred_check
      _
    $region15: #{albert_attention_forward.1} parent=1 // pred_check_branch
      %22 = sbr.rel (0) target = $region17
    $region16: #{albert_attention_forward.1} parent=1 // pred_region
      _
    $region17: #{albert_attention_forward.1} parent=1 // pred_fallthru
      _
    // Predicated region
    $region18: #{albert_attention_forward.1} parent=1 // pred_check
      _
    $region19: #{albert_attention_forward.1} parent=1 // pred_check_branch
      %24 = sbr.rel (0) target = $region21
    $region20: #{albert_attention_forward.1} parent=1 // pred_region
      _
    $region21: #{albert_attention_forward.1} parent=1 // pred_fallthru
      _
    // Predicated region
    $region22: #{albert_attention_forward.1} parent=1 // pred_check
      _
    $region23: #{albert_attention_forward.1} parent=1 // pred_check_branch
      %26 = sbr.rel (0) target = $region25
    $region24: #{albert_attention_forward.1} parent=1 // pred_region
      _
    $region25: #{albert_attention_forward.1} parent=1 // pred_fallthru
      _
    // Predicated region
    $region26: #{albert_attention_forward.1} parent=1 // pred_check
      _
    $region27: #{albert_attention_forward.1} parent=1 // pred_check_branch
      %28 = sbr.rel (0) target = $region29
    $region28: #{albert_attention_forward.1} parent=1 // pred_region
      _
    $region29: #{albert_attention_forward.1} parent=1 // pred_fallthru
      _
    // Predicated region
    $region30: #{albert_attention_forward.1} parent=1 // pred_check
      _
    $region31: #{albert_attention_forward.1} parent=1 // pred_check_branch
      %30 = sbr.rel (0) target = $region33
    $region32: #{albert_attention_forward.1} parent=1 // pred_region
      _
    $region33: #{albert_attention_forward.1} parent=1 // pred_fallthru
      _
    // Predicated region
    $region34: #{albert_attention_forward.1} parent=1 // pred_check
      _
    $region35: #{albert_attention_forward.1} parent=1 // pred_check_branch
      %32 = sbr.rel (0) target = $region37
    $region36: #{albert_attention_forward.1} parent=1 // pred_region
      _
    $region37: #{albert_attention_forward.1} parent=1 // pred_fallthru
      _
    %v34 = vld [vmem:[%s0] sm:$0xff]
    %v35 = vld [vmem:[%s0 + $0x8] sm:$0xff]
    %v36 = vpack.c.bf16 %v35, %v34
    %v37 = vld [vmem:[%s2] sm:$0xff]
    %v38 = vld [vmem:[%s2 + $0x8] sm:$0xf]
    %v39 = vld [vmem:[%s2 + $0xc] sm:$0xff]
    %v40 = vld [vmem:[%s2 + $0x14] sm:$0xf]
    %v41 = vld [vmem:[%s2 + $0x18] sm:$0xff]
    %v42 = vld [vmem:[%s2 + $0x20] sm:$0xf]
    %v43 = vld [vmem:[%s2 + $0x24] sm:$0xff]
    %v44 = vld [vmem:[%s2 + $0x2c] sm:$0xf]
    %v45 = vld [vmem:[%s4] sm:$0xff]
    %v46 = vld [vmem:[%s4 + $0x8] sm:$0xf]
    %v49 = vperm.slane %v45, 0
    %v50 = vperm.slane %v45, 4
    %v51 = vperm.slane %v46, 0
    %v55 = vperm.slane %v49, 0
    %v56 = vperm.slane %v50, 0
    %v57 = vperm.slane %v51, 0
    %v66 = vunpack.c.l.b16 %v37
    %v67 = vunpack.c.h.b16 %v37
    %v68 = vunpack.c.l.b16 %v38
    %v69 = vunpack.c.l.b16 %v39
    %v70 = vunpack.c.h.b16 %v39
    %v71 = vunpack.c.l.b16 %v40
    %v72 = vunpack.c.l.b16 %v41
    %v73 = vunpack.c.h.b16 %v41
    %v74 = vunpack.c.l.b16 %v42
    %v75 = vunpack.c.l.b16 %v43
    %v76 = vunpack.c.h.b16 %v43
    %v77 = vunpack.c.l.b16 %v44
    %v78 = vpack.c.b16 %v69, %v66
    %v79 = vpack.c.b16 %v70, %v67
    %v80 = vpack.c.b16 %v71, %v68
    %v81 = vpack.c.b16 %v75, %v72
    %v82 = vpack.c.b16 %v76, %v73
    %v83 = vpack.c.b16 %v77, %v74
    %vm90 = vcmask 261120
    %v92 = vsel %vm90, %v36, 0
    %94 = vmatpush.bf16.msra.mxu0 0
    %95 = vmatpush.bf16.msra.mxu0 0
    %96 = vmatpush.bf16.msra.mxu0 0
    %97 = vmatpush.bf16.msra.mxu0 0
    %98 = vmatpush.bf16.msra.mxu0 0
    %99 = vmatpush.bf16.msra.mxu0 0
    %100 = vmatpush.bf16.msra.mxu0 %v81
    %101 = vmatpush.bf16.msra.mxu0 %v78
    %102 = vmatmul.bf16.gmra.mxu0 %v92
    %v103 = vpop.f32.mrf.mxu0
    %v104 = vadd.f32 %v55, %v103
    %v105 = vpop.f32.mrf.mxu0
    %v106 = vadd.f32 %v55, %v105
    %107 = vdwg.mxu0
    %108 = vmatpush.bf16.msra.mxu0 0
    %109 = vmatpush.bf16.msra.mxu0 0
    %110 = vmatpush.bf16.msra.mxu0 0
    %111 = vmatpush.bf16.msra.mxu0 0
    %112 = vmatpush.bf16.msra.mxu0 0
    %113 = vmatpush.bf16.msra.mxu0 0
    %114 = vmatpush.bf16.msra.mxu0 %v82
    %115 = vmatpush.bf16.msra.mxu0 %v79
    %116 = vmatmul.bf16.gmra.mxu0 %v92
    %v117 = vpop.f32.mrf.mxu0
    %v118 = vadd.f32 %v56, %v117
    %v119 = vpop.f32.mrf.mxu0
    %v120 = vadd.f32 %v56, %v119
    %121 = vdwg.mxu0
    %122 = vmatpush.bf16.msra.mxu0 0
    %123 = vmatpush.bf16.msra.mxu0 0
    %124 = vmatpush.bf16.msra.mxu0 0
    %125 = vmatpush.bf16.msra.mxu0 0
    %126 = vmatpush.bf16.msra.mxu0 0
    %127 = vmatpush.bf16.msra.mxu0 0
    %128 = vmatpush.bf16.msra.mxu0 %v83
    %129 = vmatpush.bf16.msra.mxu0 %v80
    %130 = vmatmul.bf16.gmra.mxu0 %v92
    %v131 = vpop.f32.mrf.mxu0
    %v132 = vadd.f32 %v57, %v131
    %v133 = vpop.f32.mrf.mxu0
    %v134 = vadd.f32 %v57, %v133
    %135 = vdwg.mxu0
    %v136 = vpack.c.bf16 %v118, %v104
    %v137 = vpack.c.bf16 %v132, %v132
    %v138 = vpack.c.bf16 %v120, %v106
    %v139 = vpack.c.bf16 %v134, %v134
    %v140 = vld [vmem:[%s5] sm:$0xf]
    %v141 = vld [vmem:[%s5 + $0x4] sm:$0xf]
    %v142 = vld [vmem:[%s5 + $0x8] sm:$0xf]
    %v143 = vld [vmem:[%s5 + $0xc] sm:$0xf]
    %v144 = vld [vmem:[%s5 + $0x10] sm:$0xf]
    %v145 = vld [vmem:[%s5 + $0x14] sm:$0xf]
    %v146 = vld [vmem:[%s5 + $0x18] sm:$0xf]
    %v147 = vld [vmem:[%s5 + $0x1c] sm:$0xf]
    %v148 = vld [vmem:[%s6] sm:$0xf]
    %v149 = vld [vmem:[%s6 + $0x4] sm:$0xf]
    %v150 = vld [vmem:[%s7] sm:$0xff]
    %v151 = vld [vmem:[%s7 + $0x8] sm:$0xff]
    %v152 = vld [vmem:[%s7 + $0x10] sm:$0xff]
    %v153 = vld [vmem:[%s7 + $0x18] sm:$0xff]
    %v154 = vld [vmem:[%s7 + $0x20] sm:$0xff]
    %v155 = vld [vmem:[%s7 + $0x28] sm:$0xff]
    %v156 = vld [vmem:[%s7 + $0x30] sm:$0xff]
    %v157 = vld [vmem:[%s7 + $0x38] sm:$0xff]
    %v166 = vunpack.c.l.b16 %v140
    %v167 = vunpack.c.l.b16 %v141
    %v168 = vunpack.c.l.b16 %v142
    %v169 = vunpack.c.l.b16 %v143
    %v170 = vunpack.c.l.b16 %v144
    %v171 = vunpack.c.l.b16 %v145
    %v172 = vunpack.c.l.b16 %v146
    %v173 = vunpack.c.l.b16 %v147
    %v174 = vpack.c.b16 %v167, %v166
    %v175 = vpack.c.b16 %v169, %v168
    %v176 = vpack.c.b16 %v171, %v170
    %v177 = vpack.c.b16 %v173, %v172
    %v180 = vunpack.c.l.b16 %v136
    %v181 = vunpack.c.l.b16 %v138
    %v182 = vpack.c.b16 %v181, %v180
    %vm184 = vcmask 130048
    %v186 = vsel %vm184, %v174, 0
    %v189 = vsel %vm184, %v175, 0
    %v192 = vsel %vm184, %v176, 0
    %v195 = vsel %vm184, %v177, 0
    %197 = vmatpush.bf16.msra.mxu0 0
    %198 = vmatpush.bf16.msra.mxu0 0
    %199 = vmatpush.bf16.msra.mxu0 0
    %200 = vmatpush.bf16.msra.mxu0 0
    %201 = vmatpush.bf16.msra.mxu0 0
    %202 = vmatpush.bf16.msra.mxu0 0
    %203 = vmatpush.bf16.msra.mxu0 0
    %204 = vmatpush.bf16.msra.mxu0 %v182
    %205 = vmatmul.bf16.gmra.mxu0 %v186
    %v206 = vpop.f32.mrf.mxu0
    %v207 = vadd.f32 0.0, %v206
    %v208 = vpop.f32.mrf.mxu0
    %v209 = vadd.f32 0.0, %v208
    %210 = vmatmul.bf16.gmra.mxu0 %v189
    %v211 = vpop.f32.mrf.mxu0
    %v212 = vadd.f32 0.0, %v211
    %v213 = vpop.f32.mrf.mxu0
    %v214 = vadd.f32 0.0, %v213
    %215 = vmatmul.bf16.gmra.mxu0 %v192
    %v216 = vpop.f32.mrf.mxu0
    %v217 = vadd.f32 0.0, %v216
    %v218 = vpop.f32.mrf.mxu0
    %v219 = vadd.f32 0.0, %v218
    %220 = vmatmul.bf16.gmra.mxu0 %v195
    %v221 = vpop.f32.mrf.mxu0
    %v222 = vadd.f32 0.0, %v221
    %v223 = vpop.f32.mrf.mxu0
    %v224 = vadd.f32 0.0, %v223
    %225 = vdwg.mxu0
    %v226 = vmul.f32 %v207, %v150
    %v227 = vmul.f32 %v209, %v151
    %v228 = vmul.f32 %v212, %v152
    %v229 = vmul.f32 %v214, %v153
    %v230 = vmul.f32 %v217, %v154
    %v231 = vmul.f32 %v219, %v155
    %v232 = vmul.f32 %v222, %v156
    %v233 = vmul.f32 %v224, %v157
    %v234 = vpack.c.bf16 %v227, %v226
    %v235 = vpack.c.bf16 %v229, %v228
    %v236 = vpack.c.bf16 %v231, %v230
    %v237 = vpack.c.bf16 %v233, %v232
    %v238 = vld [vmem:[%s8] sm:$0xff]
    %v239 = vld [vmem:[%s8 + $0x8] sm:$0xff]
    %v240 = vld [vmem:[%s8 + $0x10] sm:$0xff]
    %v241 = vld [vmem:[%s8 + $0x18] sm:$0xff]
    %v242 = vld [vmem:[%s8 + $0x20] sm:$0xff]
    %v243 = vld [vmem:[%s8 + $0x28] sm:$0xff]
    %v244 = vld [vmem:[%s8 + $0x30] sm:$0xff]
    %v245 = vld [vmem:[%s8 + $0x38] sm:$0xff]
    %v246 = vunpack.c.h.b16 %v136
    %v247 = vunpack.c.h.b16 %v138
    %v248 = vpack.c.b16 %v247, %v246
    %250 = vmatpush.bf16.xpose.msra.mxu0 0
    %251 = vmatpush.bf16.xpose.msra.mxu0 0
    %252 = vmatpush.bf16.xpose.msra.mxu0 0
    %253 = vmatpush.bf16.xpose.msra.mxu0 0
    %254 = vmatpush.bf16.xpose.msra.mxu0 0
    %255 = vmatpush.bf16.xpose.msra.mxu0 0
    %256 = vmatpush.bf16.xpose.msra.mxu0 0
    %257 = vmatpush.bf16.xpose.msra.mxu0 %v248
    %258 = vmatmul.bf16.gmra.mxu0 %v234
    %v259 = vpop.f32.mrf.mxu0
    %v260 = vadd.f32 %v238, %v259
    %v261 = vpop.f32.mrf.mxu0
    %v262 = vadd.f32 %v239, %v261
    %263 = vmatmul.bf16.gmra.mxu0 %v235
    %v264 = vpop.f32.mrf.mxu0
    %v265 = vadd.f32 %v240, %v264
    %v266 = vpop.f32.mrf.mxu0
    %v267 = vadd.f32 %v241, %v266
    %268 = vmatmul.bf16.gmra.mxu0 %v236
    %v269 = vpop.f32.mrf.mxu0
    %v270 = vadd.f32 %v242, %v269
    %v271 = vpop.f32.mrf.mxu0
    %v272 = vadd.f32 %v243, %v271
    %273 = vmatmul.bf16.gmra.mxu0 %v237
    %v274 = vpop.f32.mrf.mxu0
    %v275 = vadd.f32 %v244, %v274
    %v276 = vpop.f32.mrf.mxu0
    %v277 = vadd.f32 %v245, %v276
    %278 = vdwg.mxu0
    %v279 = vld [vmem:[%s1] sm:$0x1]
    %v281 = vperm.slane %v279, 0
    %v283 = vadd.f32 %v260, %v281
    %v284 = vadd.f32 %v262, %v281
    %v285 = vadd.f32 %v265, %v281
    %v286 = vadd.f32 %v267, %v281
    %v287 = vadd.f32 %v270, %v281
    %v288 = vadd.f32 %v272, %v281
    %v289 = vadd.f32 %v275, %v281
    %v290 = vadd.f32 %v277, %v281
    %v291 = vsel %vm184, %v283, -inf
    %292 = vmax.xlane.f32.xlu0 %v291
    %v293 = vpop.xlane.xlu0 %292
    %v294 = vsel %vm184, %v284, -inf
    %295 = vmax.xlane.f32.xlu0 %v294
    %v296 = vpop.xlane.xlu0 %295
    %v297 = vsel %vm184, %v285, -inf
    %298 = vmax.xlane.f32.xlu0 %v297
    %v299 = vpop.xlane.xlu0 %298
    %v300 = vsel %vm184, %v286, -inf
    %301 = vmax.xlane.f32.xlu0 %v300
    %v302 = vpop.xlane.xlu0 %301
    %v303 = vsel %vm184, %v287, -inf
    %304 = vmax.xlane.f32.xlu0 %v303
    %v305 = vpop.xlane.xlu0 %304
    %v306 = vsel %vm184, %v288, -inf
    %307 = vmax.xlane.f32.xlu0 %v306
    %v308 = vpop.xlane.xlu0 %307
    %v309 = vsel %vm184, %v289, -inf
    %310 = vmax.xlane.f32.xlu0 %v309
    %v311 = vpop.xlane.xlu0 %310
    %v312 = vsel %vm184, %v290, -inf
    %313 = vmax.xlane.f32.xlu0 %v312
    %v314 = vpop.xlane.xlu0 %313
    %v315 = vsub.f32 %v283, %v293
    %v316 = vsub.f32 %v284, %v296
    %v317 = vsub.f32 %v285, %v299
    %v318 = vsub.f32 %v286, %v302
    %v319 = vsub.f32 %v287, %v305
    %v320 = vsub.f32 %v288, %v308
    %v321 = vsub.f32 %v289, %v311
    %v322 = vsub.f32 %v290, %v314
    %v323 = vmul.f32 %v315, 1.442695
    %v324 = vpow.pop %v323
    %v325 = vmul.f32 %v316, 1.442695
    %v326 = vpow.pop %v325
    %v327 = vmul.f32 %v317, 1.442695
    %v328 = vpow.pop %v327
    %v329 = vmul.f32 %v318, 1.442695
    %v330 = vpow.pop %v329
    %v331 = vmul.f32 %v319, 1.442695
    %v332 = vpow.pop %v331
    %v333 = vmul.f32 %v320, 1.442695
    %v334 = vpow.pop %v333
    %v335 = vmul.f32 %v321, 1.442695
    %v336 = vpow.pop %v335
    %v337 = vmul.f32 %v322, 1.442695
    %v338 = vpow.pop %v337
    %v339 = vsel %vm184, %v324, 0.0
    %340 = vadd.xlane.f32.xlu0 %v339
    %v341 = vpop.xlane.xlu0 %340
    %v342 = vsel %vm184, %v326, 0.0
    %343 = vadd.xlane.f32.xlu0 %v342
    %v344 = vpop.xlane.xlu0 %343
    %v345 = vsel %vm184, %v328, 0.0
    %346 = vadd.xlane.f32.xlu0 %v345
    %v347 = vpop.xlane.xlu0 %346
    %v348 = vsel %vm184, %v330, 0.0
    %349 = vadd.xlane.f32.xlu0 %v348
    %v350 = vpop.xlane.xlu0 %349
    %v351 = vsel %vm184, %v332, 0.0
    %352 = vadd.xlane.f32.xlu0 %v351
    %v353 = vpop.xlane.xlu0 %352
    %v354 = vsel %vm184, %v334, 0.0
    %355 = vadd.xlane.f32.xlu0 %v354
    %v356 = vpop.xlane.xlu0 %355
    %v357 = vsel %vm184, %v336, 0.0
    %358 = vadd.xlane.f32.xlu0 %v357
    %v359 = vpop.xlane.xlu0 %358
    %v360 = vsel %vm184, %v338, 0.0
    %361 = vadd.xlane.f32.xlu0 %v360
    %v362 = vpop.xlane.xlu0 %361
    %v363 = vrcp.pop %v341
    %v364 = vrcp.pop %v344
    %v365 = vrcp.pop %v347
    %v366 = vrcp.pop %v350
    %v367 = vrcp.pop %v353
    %v368 = vrcp.pop %v356
    %v369 = vrcp.pop %v359
    %v370 = vrcp.pop %v362
    %v371 = vmul.f32 %v324, %v363
    %v372 = vmul.f32 %v326, %v364
    %v373 = vmul.f32 %v328, %v365
    %v374 = vmul.f32 %v330, %v366
    %v375 = vmul.f32 %v332, %v367
    %v376 = vmul.f32 %v334, %v368
    %v377 = vmul.f32 %v336, %v369
    %v378 = vmul.f32 %v338, %v370
    %v379 = vpack.c.bf16 %v372, %v371
    %v380 = vpack.c.bf16 %v374, %v373
    %v381 = vpack.c.bf16 %v376, %v375
    %v382 = vpack.c.bf16 %v378, %v377
    %v385 = vunpack.c.l.b16 %v137
    %v386 = vunpack.c.l.b16 %v139
    %v387 = vpack.c.b16 %v386, %v385
    %v390 = vsel %vm184, %v379, 0
    %v393 = vsel %vm184, %v380, 0
    %v396 = vsel %vm184, %v381, 0
    %v399 = vsel %vm184, %v382, 0
    %401 = vmatpush.bf16.msra.mxu0 0
    %402 = vmatpush.bf16.msra.mxu0 0
    %403 = vmatpush.bf16.msra.mxu0 0
    %404 = vmatpush.bf16.msra.mxu0 0
    %405 = vmatpush.bf16.msra.mxu0 0
    %406 = vmatpush.bf16.msra.mxu0 0
    %407 = vmatpush.bf16.msra.mxu0 0
    %408 = vmatpush.bf16.msra.mxu0 %v387
    %409 = vmatmul.bf16.gmra.mxu0 %v390
    %v410 = vpop.f32.mrf.mxu0
    %v411 = vadd.f32 0.0, %v410
    %v412 = vpop.f32.mrf.mxu0
    %v413 = vadd.f32 0.0, %v412
    %414 = vmatmul.bf16.gmra.mxu0 %v393
    %v415 = vpop.f32.mrf.mxu0
    %v416 = vadd.f32 0.0, %v415
    %v417 = vpop.f32.mrf.mxu0
    %v418 = vadd.f32 0.0, %v417
    %419 = vmatmul.bf16.gmra.mxu0 %v396
    %v420 = vpop.f32.mrf.mxu0
    %v421 = vadd.f32 0.0, %v420
    %v422 = vpop.f32.mrf.mxu0
    %v423 = vadd.f32 0.0, %v422
    %424 = vmatmul.bf16.gmra.mxu0 %v399
    %v425 = vpop.f32.mrf.mxu0
    %v426 = vadd.f32 0.0, %v425
    %v427 = vpop.f32.mrf.mxu0
    %v428 = vadd.f32 0.0, %v427
    %429 = vdwg.mxu0
    %v430 = vmul.f32 %v411, %v150
    %v431 = vmul.f32 %v413, %v151
    %v432 = vmul.f32 %v416, %v152
    %v433 = vmul.f32 %v418, %v153
    %v434 = vmul.f32 %v421, %v154
    %v435 = vmul.f32 %v423, %v155
    %v436 = vmul.f32 %v426, %v156
    %v437 = vmul.f32 %v428, %v157
    %v438 = vpack.c.bf16 %v431, %v430
    %v439 = vpack.c.bf16 %v433, %v432
    %v440 = vpack.c.bf16 %v435, %v434
    %v441 = vpack.c.bf16 %v437, %v436
    %v444 = vunpack.c.l.b16 %v148
    %v445 = vunpack.c.l.b16 %v149
    %v446 = vpack.c.b16 %v445, %v444
    %vm447 = vcmask 523264
    %v449 = vsel %vm447, %v446, 0
    %451 = vmatpush.bf16.msra.mxu0 0
    %452 = vmatpush.bf16.msra.mxu0 0
    %453 = vmatpush.bf16.msra.mxu0 0
    %454 = vmatpush.bf16.msra.mxu0 0
    %455 = vmatpush.bf16.msra.mxu0 %v441
    %456 = vmatpush.bf16.msra.mxu0 %v440
    %457 = vmatpush.bf16.msra.mxu0 %v439
    %458 = vmatpush.bf16.msra.mxu0 %v438
    %459 = vmatmul.bf16.gmra.mxu0 %v449
    %v460 = vpop.f32.mrf.mxu0
    %v461 = vadd.f32 0.0, %v460
    %v462 = vpop.f32.mrf.mxu0
    %v463 = vadd.f32 0.0, %v462
    %464 = vdwg.mxu0
    %v465 = vpack.c.bf16 %v463, %v461
    %v466 = vld [vmem:[%s3] sm:$0xf]
    %v467 = vld [vmem:[%s3 + $0x4] sm:$0xf]
    %v468 = vld [vmem:[%s3 + $0x8] sm:$0xf]
    %v469 = vld [vmem:[%s3 + $0xc] sm:$0xf]
    %v470 = vld [vmem:[%s3 + $0x10] sm:$0xf]
    %v471 = vld [vmem:[%s3 + $0x14] sm:$0xf]
    %v472 = vld [vmem:[%s3 + $0x18] sm:$0xf]
    %v473 = vld [vmem:[%s3 + $0x1c] sm:$0xf]
    %v474 = vld [vmem:[%s3 + $0x20] sm:$0xf]
    %v475 = vld [vmem:[%s3 + $0x24] sm:$0xf]
    %v476 = vld [vmem:[%s3 + $0x28] sm:$0xf]
    %v477 = vld [vmem:[%s3 + $0x2c] sm:$0xf]
    %v478 = vld [vmem:[%s3 + $0x30] sm:$0xf]
    %v479 = vld [vmem:[%s3 + $0x34] sm:$0xf]
    %v480 = vld [vmem:[%s3 + $0x38] sm:$0xf]
    %v481 = vld [vmem:[%s3 + $0x3c] sm:$0xf]
    %v482 = vperm.slane %v45, 1
    %v499 = vunpack.c.l.b16 %v466
    %v500 = vunpack.c.l.b16 %v467
    %v501 = vunpack.c.l.b16 %v468
    %v502 = vunpack.c.l.b16 %v469
    %v503 = vunpack.c.l.b16 %v470
    %v504 = vunpack.c.l.b16 %v471
    %v505 = vunpack.c.l.b16 %v472
    %v506 = vunpack.c.l.b16 %v473
    %v507 = vunpack.c.l.b16 %v474
    %v508 = vunpack.c.l.b16 %v475
    %v509 = vunpack.c.l.b16 %v476
    %v510 = vunpack.c.l.b16 %v477
    %v511 = vunpack.c.l.b16 %v478
    %v512 = vunpack.c.l.b16 %v479
    %v513 = vunpack.c.l.b16 %v480
    %v514 = vunpack.c.l.b16 %v481
    %v515 = vpack.c.b16 %v500, %v499
    %v516 = vpack.c.b16 %v502, %v501
    %v517 = vpack.c.b16 %v504, %v503
    %v518 = vpack.c.b16 %v506, %v505
    %v519 = vpack.c.b16 %v508, %v507
    %v520 = vpack.c.b16 %v510, %v509
    %v521 = vpack.c.b16 %v512, %v511
    %v522 = vpack.c.b16 %v514, %v513
    %531 = vmatpush.bf16.msra.mxu0 %v522
    %532 = vmatpush.bf16.msra.mxu0 %v521
    %533 = vmatpush.bf16.msra.mxu0 %v520
    %534 = vmatpush.bf16.msra.mxu0 %v519
    %535 = vmatpush.bf16.msra.mxu0 %v518
    %536 = vmatpush.bf16.msra.mxu0 %v517
    %537 = vmatpush.bf16.msra.mxu0 %v516
    %538 = vmatpush.bf16.msra.mxu0 %v515
    %539 = vmatmul.bf16.gmra.mxu0 %v465
    %v540 = vpop.f32.mrf.mxu0
    %v541 = vadd.f32 %v482, %v540
    %v542 = vpop.f32.mrf.mxu0
    %v543 = vadd.f32 %v482, %v542
    %544 = vdwg.mxu0
    %v545 = vadd.f32 %v34, %v541
    %v546 = vadd.f32 %v35, %v543
    %v547 = vsel %vm90, %v545, 0.0
    %548 = vadd.xlane.f32.xlu0 %v547
    %v549 = vpop.xlane.xlu0 %548
    %v550 = vsel %vm90, %v546, 0.0
    %551 = vadd.xlane.f32.xlu0 %v550
    %v552 = vpop.xlane.xlu0 %551
    %v553 = vrcp.pop 32.0
    %v554 = vmul.f32 32.0, %v553
    %v555 = vsub.f32 1.0, %v554
    %v556 = vmul.f32 %v553, %v555
    %v557 = vadd.f32 %v553, %v556
    %vm558 = vweird.f32 %v553
    %v559 = vsel %vm558, %v553, %v557
    %v560 = vmul.f32 %v549, %v559
    %v561 = vmul.f32 %v552, %v559
    %v562 = vsub.f32 %v545, %v560
    %v563 = vsub.f32 %v546, %v561
    %v564 = vmul.f32 %v562, %v562
    %v565 = vmul.f32 %v563, %v563
    %v566 = vsel %vm90, %v564, 0.0
    %567 = vadd.xlane.f32.xlu0 %v566
    %v568 = vpop.xlane.xlu0 %567
    %v569 = vsel %vm90, %v565, 0.0
    %570 = vadd.xlane.f32.xlu0 %v569
    %v571 = vpop.xlane.xlu0 %570
    %v572 = vmul.f32 %v568, %v559
    %v573 = vmul.f32 %v571, %v559
    %v574 = vadd.f32 %v572, 1e-12
    %v575 = vadd.f32 %v573, 1e-12
    %v576 = vrsqrt.pop %v574
    %v577 = vmul.f32 %v576, %v574
    %v578 = vmul.f32 %v577, %v576
    %v579 = vmul.f32 0.5, %v578
    %v580 = vsub.f32 1.5, %v579
    %v581 = vmul.f32 %v576, %v580
    %vm582 = vweird.f32 %v574
    %vm583 = vweird.f32 %v576
    %vm584 = vmor %vm582, %vm583
    %v585 = vsel %vm584, %v576, %v581
    %v586 = vrsqrt.pop %v575
    %v587 = vmul.f32 %v586, %v575
    %v588 = vmul.f32 %v587, %v586
    %v589 = vmul.f32 0.5, %v588
    %v590 = vsub.f32 1.5, %v589
    %v591 = vmul.f32 %v586, %v590
    %vm592 = vweird.f32 %v575
    %vm593 = vweird.f32 %v586
    %vm594 = vmor %vm592, %vm593
    %v595 = vsel %vm594, %v586, %v591
    %v596 = vmul.f32 %v562, %v585
    %v597 = vmul.f32 %v563, %v595
    %v598 = vperm.slane %v45, 2
    %v599 = vmul.f32 %v596, %v598
    %v600 = vmul.f32 %v597, %v598
    %v601 = vperm.slane %v45, 3
    %v602 = vadd.f32 %v599, %v601
    %v603 = vadd.f32 %v600, %v601
    %604 = vst.msk [vmem:[#allocation2] sm:$0xff] %vm90, %v602
    %605 = vst.msk [vmem:[#allocation2 + $0x8] sm:$0xff] %vm90, %v603
    // Predicated region
    $region38: #{albert_attention_forward.1} parent=1 // pred_check
      _
    $region39: #{albert_attention_forward.1} parent=1 // pred_check_branch
      %607 = sbr.rel (0) target = $region41
    $region40: #{albert_attention_forward.1} parent=1 // pred_region
      %609 = vsyncadd [#allocation3], 0
      %s610 = sshll.u32 [#allocation2], 4
      %s611 = int_to_ptr.vmem [resolvable:$true] %s610
      %s612 = sshll.u32 %s9, 4
      %s613 = int_to_ptr.hbm [resolvable:$true] %s612
      %618 = dma.vmem_to_hbm [thread:$0]  %s611, 256, %s613, [#allocation3], 128, 128, 8
    $region41: #{albert_attention_forward.1} parent=1 // pred_fallthru
      _
    // Predicated region
    $region42: #{albert_attention_forward.1} parent=1 // pred_check
      _
    $region43: #{albert_attention_forward.1} parent=1 // pred_check_branch
      %620 = sbr.rel (0) target = $region45
    $region44: #{albert_attention_forward.1} parent=1 // pred_region
      %622 = dma.done [#allocation3], 256
    $region45: #{albert_attention_forward.1} parent=1 // pred_fallthru
      _
    %623 = vsyncpa [#allocation3], 1

</llo_original>
